<compile_context>
chip_gen: v7x
topology: tpu7x:2x2x1
jax: 0.10.0
libtpu: 0.0.40
codegen_flags: <defaults>
</compile_context>

<pallas_src>
import jax
import jax.numpy as jnp
from jax.experimental import pallas as pl
from jax.experimental.pallas import tpu as pltpu


def _semiphysical_kernel(x_ref, w_ref, out_ref):
    # out_T = W @ X_T   (single MXU push, f32 accumulation, cast only at store)
    out_ref[...] = jnp.dot(
        w_ref[...], x_ref[...], preferred_element_type=jnp.float32
    ).astype(out_ref.dtype)


def _round_up(n: int, m: int) -> int:
    return pl.cdiv(n, m) * m


def semiphysical_forward(
    control: jax.Array, state: jax.Array, weight: jax.Array, *, tile_n: int = 8192
) -> jax.Array:
    """control: (N, C), state: (N, S), weight: (S, C+S) [PyTorch nn.Linear layout].

    Returns (N, S) == concat([control, state], 1) @ weight.T
    """
    n, c = control.shape
    n_s, s = state.shape
    assert n_s == n
    k = c + s
    assert weight.shape == (s, k)

    # Lane-dense layout: batch on lanes.  X_T: (C+S, N)
    x_t = jnp.concatenate([control, state], axis=1).T

    # Tile the batch (lane) axis.  TN must be a multiple of 128.  Footprint per step is
    # ~4*(K+S)*TN bytes (< 1 MiB even at TN=8192), so this fits comfortably under the
    # default scoped VMEM limit on v5e/v6e (128 MiB) *and* v7x (64 MiB physical).
    tn = min(tile_n, _round_up(n, 128))
    n_pad = _round_up(n, tn)
    if n_pad != n:
        x_t = jnp.pad(x_t, ((0, 0), (0, n_pad - n)))

    grid = (n_pad // tn,)

    out_t = pl.pallas_call(
        _semiphysical_kernel,
        out_shape=jax.ShapeDtypeStruct((s, n_pad), control.dtype),
        grid=grid,
        in_specs=[
            # Stacked inputs: new batch tile each step (feature dim kept at full extent).
            pl.BlockSpec((k, tn), lambda i: (0, i)),
            # Weights: constant index_map -> stays resident in VMEM, no re-DMA per step.
            pl.BlockSpec((s, k), lambda i: (0, 0)),
        ],
        out_specs=pl.BlockSpec((s, tn), lambda i: (0, i)),
        compiler_params=pltpu.CompilerParams(
            # Batch tiles are independent -> shard across TensorCores on v7x.
            dimension_semantics=("parallel",),
        ),
        cost_estimate=pl.CostEstimate(
            flops=2 * n_pad * k * s,
            transcendentals=0,
            bytes_accessed=4 * (n_pad * k + s * k + n_pad * s),
        ),
    )(x_t, weight)

    # Back to the module's (N, S) convention; drop the padding rows.
    return out_t[:, :n].T


def reference_forward(control, state, w_full):
    # PyTorch semantics: nn.Linear(bias=False)(cat([control, state], dim=1))
    x = jnp.concatenate([control, state], axis=1)
    return x @ w_full.T


# TODO(synk): train_semiphysical / get_parameters_to_save / load_parameters are host-side
# training & (de)serialization utilities with no kernel equivalent; only forward is ported.

if __name__ == "__main__":
    # Small shapes consistent with the module: batch N, control_dim, state_dim.
    N, CONTROL_DIM, STATE_DIM = 8, 4, 8

    key = jax.random.PRNGKey(0)
    k_ctrl, k_state, k_w = jax.random.split(key, 3)

    control = jax.random.normal(k_ctrl, (N, CONTROL_DIM), dtype=jnp.float32)
    state = jax.random.normal(k_state, (N, STATE_DIM), dtype=jnp.float32)

    # nn.Linear(in=C+S, out=S, bias=False) weight: shape (S, C+S) in PyTorch convention.
    w_full = (
        jax.random.normal(k_w, (STATE_DIM, CONTROL_DIM + STATE_DIM), dtype=jnp.float32)
        * 0.1
    )

    out = semiphysical_forward(control, state, w_full)
    out = jax.block_until_ready(out)
    ref = reference_forward(control, state, w_full)
    assert out.shape == (N, STATE_DIM)
    assert jnp.allclose(out, ref, atol=1e-5, rtol=1e-5), "mismatch vs reference (small)"

    # Second check: non-multiple-of-tile batch with an explicit small tile to exercise
    # the multi-step grid + padding path.
    N2 = 300
    k_c2, k_s2 = jax.random.split(jax.random.PRNGKey(1), 2)
    control2 = jax.random.normal(k_c2, (N2, CONTROL_DIM), dtype=jnp.float32)
    state2 = jax.random.normal(k_s2, (N2, STATE_DIM), dtype=jnp.float32)

    out2 = semiphysical_forward(control2, state2, w_full, tile_n=128)
    out2 = jax.block_until_ready(out2)
    ref2 = reference_forward(control2, state2, w_full)
    assert out2.shape == (N2, STATE_DIM)
    assert jnp.allclose(out2, ref2, atol=1e-5, rtol=1e-5), "mismatch vs reference (tiled)"

    print("KERNEL_OK")
</pallas_src>

<mosaic_0001>
module attributes {stable_mosaic.version = 11 : i64} {
  func.func @_semiphysical_kernel(%arg0: i32, %arg1: memref<12x128xf32, #tpu.memory_space<vmem>>, %arg2: memref<8x12xf32, #tpu.memory_space<vmem>>, %arg3: memref<8x128xf32, #tpu.memory_space<vmem>>) attributes {dimension_semantics = [#tpu.dimension_semantics<parallel>], iteration_bounds = array<i64: 1>, scalar_prefetch = 0 : i64, scratch_operands = 0 : i64, tpu.core_type = #tpu.core_type<tc>, window_params = [{transform_indices = @transform_0, window_bounds = array<i64: 12, 128>}, {pipeline_mode = #tpu.pipeline_mode<synchronous>, transform_indices = @transform_1, window_bounds = array<i64: 8, 12>}, {transform_indices = @transform_2, window_bounds = array<i64: 8, 128>}]} {
    %c0 = arith.constant 0 : index
    %c0_0 = arith.constant 0 : index
    %0 = vector.load %arg2[%c0, %c0_0] : memref<8x12xf32, #tpu.memory_space<vmem>>, vector<8x12xf32>
    %c0_1 = arith.constant 0 : index
    %c0_2 = arith.constant 0 : index
    %1 = vector.load %arg1[%c0_1, %c0_2] : memref<12x128xf32, #tpu.memory_space<vmem>>, vector<12x128xf32>
    %cst = arith.constant dense<0.000000e+00> : vector<8x128xf32>
    %2 = tpu.matmul %0, %1, %cst {dimension_numbers = #tpu.dot_dimension_numbers<[1], [0], [0], [1], [0, 0, 1, 1], [], []>} : vector<8x12xf32>, vector<12x128xf32>, vector<8x128xf32> -> vector<8x128xf32>
    %c0_3 = arith.constant 0 : index
    %c0_4 = arith.constant 0 : index
    %3 = vector.load %arg3[%c0_3, %c0_4] : memref<8x128xf32, #tpu.memory_space<vmem>>, vector<8x128xf32>
    tpu.vector_store %arg3[%c0_3, %c0_4], %2 {strides = array<i32>} : memref<8x128xf32, #tpu.memory_space<vmem>>, vector<8x128xf32>,
    return
  }
  func.func @transform_0(%arg0: i32) -> (i32, i32) {
    %c0_i32 = arith.constant 0 : i32
    %c0_i32_0 = arith.constant 0 : i32
    return %c0_i32, %arg0 : i32, i32
  }
  func.func @transform_1(%arg0: i32) -> (i32, i32) {
    %c0_i32 = arith.constant 0 : i32
    %c0_i32_0 = arith.constant 0 : i32
    %c0_i32_1 = arith.constant 0 : i32
    return %c0_i32, %c0_i32_0 : i32, i32
  }
  func.func @transform_2(%arg0: i32) -> (i32, i32) {
    %c0_i32 = arith.constant 0 : i32
    %c0_i32_0 = arith.constant 0 : i32
    return %c0_i32, %arg0 : i32, i32
  }
}

</mosaic_0001>

<llo_original>
// kernel: tpu_custom_call.1
$region0: #{tpu_custom_call.1}
  #allocation0 [shape = 'u32[]', space=smem, size = 0x4, offset = 0x4, fixed_abs, tag = 'smem constant byte address 0x4 - core index']
  #allocation1 [shape = 'u32[144,128]{1,0:T(1,128)}', space=vmem, size = 0x12000, scoped, tag = 'internal scratch']
  %s0 = inlined_call_operand.hbm [shape: f32[12,128], index: 0, kind: input, shape index: {}]
  %s1 = inlined_call_operand.hbm [shape: f32[8,12], index: 1, kind: input, shape index: {}]
  %s2 = inlined_call_operand.hbm [shape: f32[8,128], index: 2, kind: output, shape index: {}]
  %s3 = sld [smem:[#allocation0]]
  $region26: #{tpu_custom_call.1} parent=0
    _
  %s5 = ssub.s32 1, %s3
  %s6 = scalar_select 0, %s5, %s3
  $region1: #{tpu_custom_call.1} parent=0
    #allocation2 [shape = 'u8[8192]{0}', space=vmem, size = 0x2000, scoped, tag = 'input window, operand 0, single buffered']
    #allocation3 [shape = 's32[1]{0}', space=sflag, size = 0x4, scoped, tag = 'scoped memory for tpu_custom_call.1']
    #allocation4 [shape = 's32[1]{0}', space=sflag, size = 0x4, scoped, tag = 'scoped memory for tpu_custom_call.1']
    #allocation5 [shape = 'u8[4096]{0}', space=vmem, size = 0x1000, scoped, tag = 'input window, operand 1, single buffered']
    #allocation6 [shape = 's32[1]{0}', space=sflag, size = 0x4, scoped, tag = 'scoped memory for tpu_custom_call.1']
    #allocation7 [shape = 'u8[4096]{0}', space=vmem, size = 0x1000, scoped, tag = 'output window, operand 0, single buffered']
    %7 = vsyncpa [#allocation3], 0
    %8 = vsyncpa [#allocation6], 0
    %9 = vsyncpa [#allocation4], 0
    // Predicated region
    $region2: #{tpu_custom_call.1} parent=1 // pred_check
      _
    $region3: #{tpu_custom_call.1} parent=1 // pred_check_branch
      %11 = sbr.rel (0) target = $region5
    $region4: #{tpu_custom_call.1} parent=1 // pred_region
      %s13 = ssub.s32 256, 256
      %14 = vsyncadd [#allocation3], %s13
      %s15 = sshll.u32 [#allocation2], 4
      %s16 = int_to_ptr.vmem [resolvable:$true] %s15
      %21 = dma.hbm_to_vmem [thread:$0]  %s0, 256, %s16, [#allocation3], 128, 128, 8
    $region5: #{tpu_custom_call.1} parent=1 // pred_fallthru
      _
    // Predicated region
    $region6: #{tpu_custom_call.1} parent=1 // pred_check
      _
    $region7: #{tpu_custom_call.1} parent=1 // pred_check_branch
      %23 = sbr.rel (0) target = $region9
    $region8: #{tpu_custom_call.1} parent=1 // pred_region
      %s25 = ssub.s32 128, 128
      %26 = vsyncadd [#allocation6], %s25
      %s28 = sshll.u32 [#allocation5], 4
      %s29 = int_to_ptr.vmem [resolvable:$true] %s28
      %31 = dma.hbm_to_vmem [thread:$0]  %s1, 128, %s29, [#allocation6]
    $region9: #{tpu_custom_call.1} parent=1 // pred_fallthru
      _
    // Predicated region
    $region10: #{tpu_custom_call.1} parent=1 // pred_check
      _
    $region11: #{tpu_custom_call.1} parent=1 // pred_check_branch
      %33 = sbr.rel (0) target = $region13
    $region12: #{tpu_custom_call.1} parent=1 // pred_region
      %34 = dma.done [#allocation3], 256
    $region13: #{tpu_custom_call.1} parent=1 // pred_fallthru
      _
    // Predicated region
    $region14: #{tpu_custom_call.1} parent=1 // pred_check
      _
    $region15: #{tpu_custom_call.1} parent=1 // pred_check_branch
      %36 = sbr.rel (0) target = $region17
    $region16: #{tpu_custom_call.1} parent=1 // pred_region
      %37 = dma.done [#allocation6], 128
    $region17: #{tpu_custom_call.1} parent=1 // pred_fallthru
      _
    %v38 = vld [vmem:[#allocation5] sm:$0xff]
    %v39 = vld [vmem:[#allocation2] sm:$0xff]
    %v40 = vld [vmem:[#allocation2 + $0x8] sm:$0xf]
    %vm41 = vcmask 97280
    %v43 = vsel %vm41, %v38, 0
    %vm45 = vcmask 1043456
    %v47 = vsel %vm45, %v40, 0
    %49 = vmatprep.subr.mxu0 0.0
    %50 = vmatpush1.msra.mxu0 %v39
    %51 = vmatprep.subr.mxu0 0.0
    %52 = vmatpush1.msra.mxu0 %v47
    %53 = vmatprep.subr.mxu0 0.0
    %54 = vmatpush1.msra.mxu0 0.0
    %55 = vmatprep.subr.mxu0 0.0
    %56 = vmatpush1.msra.mxu0 0.0
    %57 = vmatprep.subr.mxu0 0.0
    %58 = vmatpush1.msra.mxu0 0.0
    %59 = vmatprep.subr.mxu0 0.0
    %60 = vmatpush1.msra.mxu0 0.0
    %61 = vmatprep.subr.mxu0 0.0
    %62 = vmatpush1.msra.mxu0 0.0
    %63 = vmatprep.subr.mxu0 0.0
    %64 = vmatpush1.msra.mxu0 0.0
    %65 = vmatprep.subr.mxu0 0.0
    %66 = vmatpush1.msra.mxu0 0.0
    %67 = vmatprep.subr.mxu0 0.0
    %68 = vmatpush1.msra.mxu0 0.0
    %69 = vmatprep.subr.mxu0 0.0
    %70 = vmatpush1.msra.mxu0 0.0
    %71 = vmatprep.subr.mxu0 0.0
    %72 = vmatpush1.msra.mxu0 0.0
    %73 = vmatprep.subr.mxu0 0.0
    %74 = vmatpush1.msra.mxu0 0.0
    %75 = vmatprep.subr.mxu0 0.0
    %76 = vmatpush1.msra.mxu0 0.0
    %77 = vmatprep.subr.mxu0 0.0
    %78 = vmatpush1.msra.mxu0 0.0
    %79 = vmatprep.subr.mxu0 0.0
    %80 = vmatpush1.msra.mxu0 0.0
    %81 = vmatprep.subr.mxu0 0.0
    %82 = vmatpush1.msra.mxu0 0.0
    %83 = vmatprep.subr.mxu0 0.0
    %84 = vmatpush1.msra.mxu0 0.0
    %85 = vmatprep.subr.mxu0 0.0
    %86 = vmatpush1.msra.mxu0 0.0
    %87 = vmatprep.subr.mxu0 0.0
    %88 = vmatpush1.msra.mxu0 0.0
    %89 = vmatprep.subr.mxu0 0.0
    %90 = vmatpush1.msra.mxu0 0.0
    %91 = vmatprep.subr.mxu0 0.0
    %92 = vmatpush1.msra.mxu0 0.0
    %93 = vmatprep.subr.mxu0 0.0
    %94 = vmatpush1.msra.mxu0 0.0
    %95 = vmatprep.subr.mxu0 0.0
    %96 = vmatpush1.msra.mxu0 0.0
    %97 = vmatprep.subr.mxu0 0.0
    %98 = vmatpush1.msra.mxu0 0.0
    %99 = vmatprep.subr.mxu0 0.0
    %100 = vmatpush1.msra.mxu0 0.0
    %101 = vmatprep.subr.mxu0 0.0
    %102 = vmatpush1.msra.mxu0 0.0
    %103 = vmatprep.subr.mxu0 0.0
    %104 = vmatpush1.msra.mxu0 0.0
    %105 = vmatprep.subr.mxu0 0.0
    %106 = vmatpush1.msra.mxu0 0.0
    %107 = vmatprep.subr.mxu0 0.0
    %108 = vmatpush1.msra.mxu0 0.0
    %109 = vmatprep.subr.mxu0 0.0
    %110 = vmatpush1.msra.mxu0 0.0
    %111 = vmatprep.subr.mxu0 0.0
    %112 = vmatpush1.msra.mxu0 0.0
    %113 = vmatprep.mubr.f32.mxu0 0.0
    %114 = vmatmul.mubr.f32.gmra.mrb[0].mxu0 %v43
    %v115 = vpop.f32.mrb[0].mxu0
    %v116 = vadd.f32 0.0, %v115
    %v117 = vpop.f32.mrb[0].mxu0
    %118 = vdwg.mxu0
    %119 = vst [vmem:[#allocation7] sm:$0xff] %v116
    // Predicated region
    $region18: #{tpu_custom_call.1} parent=1 // pred_check
      _
    $region19: #{tpu_custom_call.1} parent=1 // pred_check_branch
      %121 = sbr.rel (0) target = $region21
    $region20: #{tpu_custom_call.1} parent=1 // pred_region
      %s123 = ssub.s32 128, 128
      %124 = vsyncadd [#allocation4], %s123
      %s126 = sshll.u32 [#allocation7], 4
      %s127 = int_to_ptr.vmem [resolvable:$true] %s126
      %129 = dma.vmem_to_hbm [thread:$0]  %s127, 128, %s2, [#allocation4]
    $region21: #{tpu_custom_call.1} parent=1 // pred_fallthru
      _
    // Predicated region
    $region22: #{tpu_custom_call.1} parent=1 // pred_check
      _
    $region23: #{tpu_custom_call.1} parent=1 // pred_check_branch
      %131 = sbr.rel (0) target = $region25
    $region24: #{tpu_custom_call.1} parent=1 // pred_region
      %132 = dma.done [#allocation4], 128
    $region25: #{tpu_custom_call.1} parent=1 // pred_fallthru
      _
    %133 = vsyncpa [#allocation3], 1
    %134 = vsyncpa [#allocation6], 1
    %135 = vsyncpa [#allocation4], 1

</llo_original>
